<compile_context>
chip_gen: v5e
topology: v5e:2x2
jax: 0.10.0
libtpu: 0.0.40
codegen_flags: <defaults>
</compile_context>

<pallas_src>
import jax
import jax.numpy as jnp
from jax.experimental import pallas as pl
from jax.experimental.pallas import tpu as pltpu

# Candidate kernel sizes, mirroring the docstring example
# MixedOp(OrderedDict([("conv3x3", ...), ("conv5x5", ...), ("conv7x7", ...)]))
KS = (3, 5, 7)
PMAX = max(k // 2 for k in KS)   # shared halo so all candidates share one padded input
KMAX = 2 * PMAX + 1              # number of folded vertical taps


def mixed_op_kernel(x_ref, w_ref, b_ref, o_ref):
    """One batch-tile of the mask-combined mixed conv.

    x_ref: VMEM (nb, HP, wcin_pad)        padded, lane-merged, lane-padded images
    w_ref: VMEM (KMAX*wcin_pad, wcout)    mask-combined banded weights
    b_ref: VMEM (1, wcout)                mask-combined bias tiled over W
    o_ref: VMEM (nb, H, wcout)            lane-dense output slab
    """
    nb, hp, wcin_pad = x_ref.shape
    _, h, wcout = o_ref.shape
    kmax = hp - h + 1

    # Fold the vertical taps into the contraction dim: LHS is (nb*h, kmax*wcin_pad),
    # built from static shifted row slabs as an SSA value (no scratch round-trips).
    imgs = []
    for b in range(nb):
        taps = [x_ref[b, kh:kh + h, :] for kh in range(kmax)]
        imgs.append(jnp.concatenate(taps, axis=-1))          # (h, kmax*wcin_pad)
    lhs = imgs[0] if nb == 1 else jnp.concatenate(imgs, axis=0)

    # Single MXU matmul per grid step; mask/mean already folded into w_ref/b_ref.
    y = jnp.dot(lhs, w_ref[...], preferred_element_type=jnp.float32)
    y = y + b_ref[...]                                        # (1, wcout) broadcast

    for b in range(nb):
        o_ref[b, :, :] = y[b * h:(b + 1) * h, :].astype(o_ref.dtype)


def _build_banded_weight(w_hwio, w_out, wp, off, kmax):
    """Embed a (k,k,Cin,Cout) conv weight into kmax banded matmul taps.

    Returns B of shape (kmax, wp*Cin, w_out*Cout) with nonzero taps only at
    global tap indices g in [off, off+k), such that with
    L_g[t, p*Cin+ci] = x_padded[t + g, p, ci],
    sum_g L_g @ B[g] equals the stride-1 'same' convolution of x with w_hwio.
    Built once in the wrapper (weight-sized work).
    """
    k, _, cin, cout = w_hwio.shape
    p_idx = jnp.arange(wp)[:, None]            # padded column index
    o_idx = jnp.arange(w_out)[None, :]         # output column index
    mats = []
    for g in range(kmax):
        kh = g - off
        if 0 <= kh < k:
            bk = jnp.zeros((wp, cin, w_out, cout), jnp.float32)
            for kw in range(k):
                sel = (p_idx == o_idx + off + kw).astype(jnp.float32)   # (wp, w_out)
                bk = bk + sel[:, None, :, None] * w_hwio[kh, kw][None, :, None, :]
            mats.append(bk.reshape(wp * cin, w_out * cout))
        else:
            mats.append(jnp.zeros((wp * cin, w_out * cout), jnp.float32))
    return jnp.stack(mats, axis=0)


def _pick_batch_tile(n, h, hp, wcin_pad, itemsize, vmem_budget=8 << 20):
    """Largest divisor of n whose double-buffered x block fits the budget,
    stopping once M = nb*h is comfortably MXU-sized."""
    best = 1
    for nb in range(1, n + 1):
        if n % nb:
            continue
        if 2 * nb * hp * wcin_pad * itemsize > vmem_budget:
            break
        best = nb
        if nb * h >= 256:
            break
    return best


def mixed_op_forward(x_nchw, params, mask, reduction='sum', return_mask=False,
                     matmul_dtype=jnp.float32):
    """MixedOp.forward: apply masked candidate convs and reduce.

    x_nchw: (N, Cin, H, W) float32
    params: dict with 'w{k}' (k,k,Cin,Cout) and 'b{k}' (1,Cout) for k in KS
    mask:   (len(KS),) selection mask from the mutator (any dtype; kept exact)
    """
    x = jnp.transpose(x_nchw, (0, 2, 3, 1)).astype(jnp.float32)   # NHWC
    n, h, w, cin = x.shape
    cout = params[f'w{KS[0]}'].shape[-1]
    hp, wp = h + 2 * PMAX, w + 2 * PMAX
    wcin = wp * cin
    wcin_pad = ((wcin + 127) // 128) * 128     # lane-pad K to a 128 multiple
    wcout = w * cout

    maskf = jnp.asarray(mask).astype(jnp.float32)   # exact for non-binary (DARTS) masks

    # Mask-combined banded weights / bias (wrapper-side, weight-sized work).
    w_mix = jnp.zeros((KMAX, wcin, wcout), jnp.float32)
    b_mix = jnp.zeros((cout,), jnp.float32)
    for i, k in enumerate(KS):
        off = PMAX - k // 2
        wb = _build_banded_weight(params[f'w{k}'].astype(jnp.float32), w, wp, off, KMAX)
        w_mix = w_mix + maskf[i] * wb
        b_mix = b_mix + maskf[i] * params[f'b{k}'].astype(jnp.float32).reshape(cout)

    if reduction == 'mean':
        denom = jnp.maximum(jnp.sum(maskf), 1.0)
        w_mix = w_mix / denom
        b_mix = b_mix / denom
    elif reduction != 'sum':
        # TODO(synk): reduction='none' (per-candidate list) and 'concat' (channel
        # concat) are Python-level list-returning policies, not one fused kernel.
        raise NotImplementedError(f"reduction={reduction!r}")

    # Zero-pad K rows to wcin_pad and flatten taps into the contraction dim.
    w_mix = jnp.pad(w_mix, ((0, 0), (0, wcin_pad - wcin), (0, 0)))
    w_mix = w_mix.reshape(KMAX * wcin_pad, wcout).astype(matmul_dtype)
    b_tile = jnp.tile(b_mix.reshape(1, cout), (1, w))              # (1, wcout) f32

    # Shared "same" halo for the largest candidate; lane-merge (W, Cin); lane-pad.
    xp = jnp.pad(x, ((0, 0), (PMAX, PMAX), (PMAX, PMAX), (0, 0)))
    xp = xp.reshape(n, hp, wcin)
    xp = jnp.pad(xp, ((0, 0), (0, 0), (0, wcin_pad - wcin))).astype(matmul_dtype)

    itemsize = jnp.dtype(matmul_dtype).itemsize
    nb = _pick_batch_tile(n, h, hp, wcin_pad, itemsize)
    grid = (n // nb,)
    # TODO(synk): at production H/W/Cin, replace the whole-image x block with halo
    # row-tiles (pl.Element row windows or manual double-buffered DMA) so the
    # per-step footprint stays O(TH*wcin_pad) within v7x's 64 MiB VMEM, and
    # single-buffer the constant weight spec (pipeline_mode=pl.Buffered(1)).

    grid_spec = pltpu.PrefetchScalarGridSpec(
        num_scalar_prefetch=0,
        grid=grid,
        in_specs=[
            # nb whole padded images per step; pipelined across batch tiles.
            pl.BlockSpec((nb, hp, wcin_pad), lambda i: (i, 0, 0)),
            # Constant index_maps: combined weights/bias DMA'd once, VMEM-resident.
            pl.BlockSpec(w_mix.shape, lambda i: (0, 0)),
            pl.BlockSpec(b_tile.shape, lambda i: (0, 0)),
        ],
        out_specs=pl.BlockSpec((nb, h, wcout), lambda i: (i, 0, 0)),
    )

    out_slab = pl.pallas_call(
        mixed_op_kernel,
        out_shape=jax.ShapeDtypeStruct((n, h, wcout), jnp.float32),
        grid_spec=grid_spec,
        compiler_params=pltpu.CompilerParams(
            dimension_semantics=("parallel",)),
    )(xp, w_mix, b_tile)

    out = jnp.transpose(out_slab.reshape(n, h, w, cout), (0, 3, 1, 2))   # NCHW
    if return_mask:
        return out, mask
    return out


def _reference(x_nchw, params, mask):
    """Pure-JAX reference (lax conv) for correctness checking."""
    x = jnp.transpose(x_nchw, (0, 2, 3, 1)).astype(jnp.float32)
    cout = params[f'w{KS[0]}'].shape[-1]
    ref = jnp.zeros(x.shape[:3] + (cout,), jnp.float32)
    for i, k in enumerate(KS):
        y = jax.lax.conv_general_dilated(
            x, params[f'w{k}'].astype(jnp.float32), (1, 1), 'SAME',
            dimension_numbers=('NHWC', 'HWIO', 'NHWC'))
        y = y + params[f'b{k}'].reshape(1, 1, 1, cout)
        ref = ref + mask[i].astype(jnp.float32) * y
    return jnp.transpose(ref, (0, 3, 1, 2))


if __name__ == "__main__":
    key = jax.random.PRNGKey(0)
    N, Cin, H, W, Cout = 2, 4, 16, 16, 8

    keys = jax.random.split(key, 1 + 2 * len(KS))
    x = jax.random.normal(keys[0], (N, Cin, H, W), jnp.float32)

    # Deterministic PyTorch-style (Kaiming-uniform-ish) parameter init.
    params = {}
    for i, k in enumerate(KS):
        fan_in = Cin * k * k
        bound = 1.0 / (fan_in ** 0.5)
        params[f'w{k}'] = jax.random.uniform(
            keys[1 + 2 * i], (k, k, Cin, Cout), jnp.float32, -bound, bound)
        params[f'b{k}'] = jax.random.uniform(
            keys[2 + 2 * i], (1, Cout), jnp.float32, -bound, bound)

    # The mutator's decision: select candidate 0 (conv3x3) and 2 (conv7x7).
    # Kept as float so non-binary (DARTS-style) masks stay exact.
    mask = jnp.array([1.0, 0.0, 1.0], dtype=jnp.float32)

    out = jax.block_until_ready(mixed_op_forward(x, params, mask, reduction='sum'))
    ref = jax.block_until_ready(_reference(x, params, mask))
    assert out.shape == (N, Cout, H, W), out.shape
    assert jnp.allclose(out, ref, atol=1e-4, rtol=1e-4), "mismatch vs reference (sum)"

    out_mean = jax.block_until_ready(
        mixed_op_forward(x, params, mask, reduction='mean'))
    ref_mean = ref / jnp.maximum(jnp.sum(mask), 1.0)
    assert jnp.allclose(out_mean, ref_mean, atol=1e-4, rtol=1e-4), "mismatch (mean)"

    print("KERNEL_OK")
</pallas_src>

<mosaic_0001>
module attributes {stable_mosaic.version = 11 : i64} {
  func.func @mixed_op_kernel(%arg0: i32, %arg1: memref<2x22x128xf32, #tpu.memory_space<vmem>>, %arg2: memref<896x128xf32, #tpu.memory_space<vmem>>, %arg3: memref<1x128xf32, #tpu.memory_space<vmem>>, %arg4: memref<2x16x128xf32, #tpu.memory_space<vmem>>) attributes {dimension_semantics = [#tpu.dimension_semantics<parallel>], iteration_bounds = array<i64: 1>, scalar_prefetch = 0 : i64, scratch_operands = 0 : i64, tpu.core_type = #tpu.core_type<tc>, window_params = [{transform_indices = @transform_0, window_bounds = array<i64: 2, 22, 128>}, {pipeline_mode = #tpu.pipeline_mode<synchronous>, transform_indices = @transform_1, window_bounds = array<i64: 896, 128>}, {pipeline_mode = #tpu.pipeline_mode<synchronous>, transform_indices = @transform_2, window_bounds = array<i64: 1, 128>}, {transform_indices = @transform_3, window_bounds = array<i64: 2, 16, 128>}]} {
    %c0 = arith.constant 0 : index
    %c0_0 = arith.constant 0 : index
    %c0_1 = arith.constant 0 : index
    %0 = vector.load %arg1[%c0, %c0_0, %c0_1] : memref<2x22x128xf32, #tpu.memory_space<vmem>>, vector<1x16x128xf32>
    %1 = vector.shape_cast %0 : vector<1x16x128xf32> to vector<16x128xf32>
    %c0_2 = arith.constant 0 : index
    %c1 = arith.constant 1 : index
    %c0_3 = arith.constant 0 : index
    %2 = vector.load %arg1[%c0_2, %c1, %c0_3] : memref<2x22x128xf32, #tpu.memory_space<vmem>>, vector<1x16x128xf32>
    %3 = vector.shape_cast %2 : vector<1x16x128xf32> to vector<16x128xf32>
    %c0_4 = arith.constant 0 : index
    %c2 = arith.constant 2 : index
    %c0_5 = arith.constant 0 : index
    %4 = vector.load %arg1[%c0_4, %c2, %c0_5] : memref<2x22x128xf32, #tpu.memory_space<vmem>>, vector<1x16x128xf32>
    %5 = vector.shape_cast %4 : vector<1x16x128xf32> to vector<16x128xf32>
    %c0_6 = arith.constant 0 : index
    %c3 = arith.constant 3 : index
    %c0_7 = arith.constant 0 : index
    %6 = vector.load %arg1[%c0_6, %c3, %c0_7] : memref<2x22x128xf32, #tpu.memory_space<vmem>>, vector<1x16x128xf32>
    %7 = vector.shape_cast %6 : vector<1x16x128xf32> to vector<16x128xf32>
    %c0_8 = arith.constant 0 : index
    %c4 = arith.constant 4 : index
    %c0_9 = arith.constant 0 : index
    %8 = vector.load %arg1[%c0_8, %c4, %c0_9] : memref<2x22x128xf32, #tpu.memory_space<vmem>>, vector<1x16x128xf32>
    %9 = vector.shape_cast %8 : vector<1x16x128xf32> to vector<16x128xf32>
    %c0_10 = arith.constant 0 : index
    %c5 = arith.constant 5 : index
    %c0_11 = arith.constant 0 : index
    %10 = vector.load %arg1[%c0_10, %c5, %c0_11] : memref<2x22x128xf32, #tpu.memory_space<vmem>>, vector<1x16x128xf32>
    %11 = vector.shape_cast %10 : vector<1x16x128xf32> to vector<16x128xf32>
    %c0_12 = arith.constant 0 : index
    %c6 = arith.constant 6 : index
    %c0_13 = arith.constant 0 : index
    %12 = vector.load %arg1[%c0_12, %c6, %c0_13] : memref<2x22x128xf32, #tpu.memory_space<vmem>>, vector<1x16x128xf32>
    %13 = vector.shape_cast %12 : vector<1x16x128xf32> to vector<16x128xf32>
    %14 = tpu.concatenate %1, %3, %5, %7, %9, %11, %13 in 1 : vector<16x128xf32>, vector<16x128xf32>, vector<16x128xf32>, vector<16x128xf32>, vector<16x128xf32>, vector<16x128xf32>, vector<16x128xf32> -> vector<16x896xf32>
    %c1_14 = arith.constant 1 : index
    %c0_15 = arith.constant 0 : index
    %c0_16 = arith.constant 0 : index
    %15 = vector.load %arg1[%c1_14, %c0_15, %c0_16] : memref<2x22x128xf32, #tpu.memory_space<vmem>>, vector<1x16x128xf32>
    %16 = vector.shape_cast %15 : vector<1x16x128xf32> to vector<16x128xf32>
    %c1_17 = arith.constant 1 : index
    %c1_18 = arith.constant 1 : index
    %c0_19 = arith.constant 0 : index
    %17 = vector.load %arg1[%c1_17, %c1_18, %c0_19] : memref<2x22x128xf32, #tpu.memory_space<vmem>>, vector<1x16x128xf32>
    %18 = vector.shape_cast %17 : vector<1x16x128xf32> to vector<16x128xf32>
    %c1_20 = arith.constant 1 : index
    %c2_21 = arith.constant 2 : index
    %c0_22 = arith.constant 0 : index
    %19 = vector.load %arg1[%c1_20, %c2_21, %c0_22] : memref<2x22x128xf32, #tpu.memory_space<vmem>>, vector<1x16x128xf32>
    %20 = vector.shape_cast %19 : vector<1x16x128xf32> to vector<16x128xf32>
    %c1_23 = arith.constant 1 : index
    %c3_24 = arith.constant 3 : index
    %c0_25 = arith.constant 0 : index
    %21 = vector.load %arg1[%c1_23, %c3_24, %c0_25] : memref<2x22x128xf32, #tpu.memory_space<vmem>>, vector<1x16x128xf32>
    %22 = vector.shape_cast %21 : vector<1x16x128xf32> to vector<16x128xf32>
    %c1_26 = arith.constant 1 : index
    %c4_27 = arith.constant 4 : index
    %c0_28 = arith.constant 0 : index
    %23 = vector.load %arg1[%c1_26, %c4_27, %c0_28] : memref<2x22x128xf32, #tpu.memory_space<vmem>>, vector<1x16x128xf32>
    %24 = vector.shape_cast %23 : vector<1x16x128xf32> to vector<16x128xf32>
    %c1_29 = arith.constant 1 : index
    %c5_30 = arith.constant 5 : index
    %c0_31 = arith.constant 0 : index
    %25 = vector.load %arg1[%c1_29, %c5_30, %c0_31] : memref<2x22x128xf32, #tpu.memory_space<vmem>>, vector<1x16x128xf32>
    %26 = vector.shape_cast %25 : vector<1x16x128xf32> to vector<16x128xf32>
    %c1_32 = arith.constant 1 : index
    %c6_33 = arith.constant 6 : index
    %c0_34 = arith.constant 0 : index
    %27 = vector.load %arg1[%c1_32, %c6_33, %c0_34] : memref<2x22x128xf32, #tpu.memory_space<vmem>>, vector<1x16x128xf32>
    %28 = vector.shape_cast %27 : vector<1x16x128xf32> to vector<16x128xf32>
    %29 = tpu.concatenate %16, %18, %20, %22, %24, %26, %28 in 1 : vector<16x128xf32>, vector<16x128xf32>, vector<16x128xf32>, vector<16x128xf32>, vector<16x128xf32>, vector<16x128xf32>, vector<16x128xf32> -> vector<16x896xf32>
    %30 = tpu.concatenate %14, %29 in 0 : vector<16x896xf32>, vector<16x896xf32> -> vector<32x896xf32>
    %c0_35 = arith.constant 0 : index
    %c0_36 = arith.constant 0 : index
    %31 = vector.load %arg2[%c0_35, %c0_36] : memref<896x128xf32, #tpu.memory_space<vmem>>, vector<896x128xf32>
    %cst = arith.constant dense<0.000000e+00> : vector<32x128xf32>
    %32 = tpu.matmul %30, %31, %cst {dimension_numbers = #tpu.dot_dimension_numbers<[1], [0], [0], [1], [0, 0, 1, 1], [], []>} : vector<32x896xf32>, vector<896x128xf32>, vector<32x128xf32> -> vector<32x128xf32>
    %c0_37 = arith.constant 0 : index
    %c0_38 = arith.constant 0 : index
    %33 = vector.load %arg3[%c0_37, %c0_38] : memref<1x128xf32, #tpu.memory_space<vmem>>, vector<1x128xf32>
    %34 = vector.broadcast %33 : vector<1x128xf32> to vector<32x128xf32>
    %35 = arith.addf %32, %34 : vector<32x128xf32>
    %36 = vector.extract_strided_slice %35 {offsets = [0, 0], sizes = [16, 128], strides = [1, 1]} : vector<32x128xf32> to vector<16x128xf32>
    %c0_39 = arith.constant 0 : index
    %c0_40 = arith.constant 0 : index
    %c0_41 = arith.constant 0 : index
    %37 = vector.load %arg4[%c0_39, %c0_40, %c0_41] : memref<2x16x128xf32, #tpu.memory_space<vmem>>, vector<1x16x128xf32>
    %38 = vector.shape_cast %37 : vector<1x16x128xf32> to vector<16x128xf32>
    %39 = vector.shape_cast %36 : vector<16x128xf32> to vector<1x16x128xf32>
    tpu.vector_store %arg4[%c0_39, %c0_40, %c0_41], %39 {strides = array<i32>} : memref<2x16x128xf32, #tpu.memory_space<vmem>>, vector<1x16x128xf32>,
    %40 = vector.extract_strided_slice %35 {offsets = [16, 0], sizes = [16, 128], strides = [1, 1]} : vector<32x128xf32> to vector<16x128xf32>
    %c1_42 = arith.constant 1 : index
    %c0_43 = arith.constant 0 : index
    %c0_44 = arith.constant 0 : index
    %41 = vector.load %arg4[%c1_42, %c0_43, %c0_44] : memref<2x16x128xf32, #tpu.memory_space<vmem>>, vector<1x16x128xf32>
    %42 = vector.shape_cast %41 : vector<1x16x128xf32> to vector<16x128xf32>
    %43 = vector.shape_cast %40 : vector<16x128xf32> to vector<1x16x128xf32>
    tpu.vector_store %arg4[%c1_42, %c0_43, %c0_44], %43 {strides = array<i32>} : memref<2x16x128xf32, #tpu.memory_space<vmem>>, vector<1x16x128xf32>,
    return
  }
  func.func @transform_0(%arg0: i32) -> (i32, i32, i32) {
    %c0_i32 = arith.constant 0 : i32
    %c0_i32_0 = arith.constant 0 : i32
    %c0_i32_1 = arith.constant 0 : i32
    return %arg0, %c0_i32, %c0_i32_0 : i32, i32, i32
  }
  func.func @transform_1(%arg0: i32) -> (i32, i32) {
    %c0_i32 = arith.constant 0 : i32
    %c0_i32_0 = arith.constant 0 : i32
    %c0_i32_1 = arith.constant 0 : i32
    return %c0_i32, %c0_i32_0 : i32, i32
  }
  func.func @transform_2(%arg0: i32) -> (i32, i32) {
    %c0_i32 = arith.constant 0 : i32
    %c0_i32_0 = arith.constant 0 : i32
    %c0_i32_1 = arith.constant 0 : i32
    return %c0_i32, %c0_i32_0 : i32, i32
  }
  func.func @transform_3(%arg0: i32) -> (i32, i32, i32) {
    %c0_i32 = arith.constant 0 : i32
    %c0_i32_0 = arith.constant 0 : i32
    %c0_i32_1 = arith.constant 0 : i32
    return %arg0, %c0_i32, %c0_i32_0 : i32, i32, i32
  }
}

</mosaic_0001>

<llo_original>
// kernel: tpu_custom_call.1
$region0: #{tpu_custom_call.1}
  #allocation0 [shape = 'u32[]', space=smem, size = 0x4, offset = 0x4, fixed_abs, tag = 'smem constant byte address 0x4 - core index']
  #allocation1 [shape = 'u32[72,128]{1,0:T(1,128)}', space=vmem, size = 0x9000, scoped, tag = 'internal scratch']
  %s0 = inlined_call_operand.vmem [shape: f32[2,22,128], index: 0, kind: input, shape index: {}]
  %s1 = inlined_call_operand.hbm [shape: f32[896,128], index: 1, kind: input, shape index: {}]
  %s2 = inlined_call_operand.vmem [shape: f32[1,128], index: 2, kind: input, shape index: {}]
  %s3 = inlined_call_operand.hbm [shape: f32[2,16,128], index: 3, kind: output, shape index: {}]
  %s4 = sld [smem:[#allocation0]]
  $region26: #{tpu_custom_call.1} parent=0
    _
  %s6 = ssub.s32 1, %s4
  %s7 = scalar_select 0, %s6, %s4
  $region1: #{tpu_custom_call.1} parent=0
    #allocation2 [shape = 'u8[458752]{0}', space=vmem, size = 0x70000, scoped, tag = 'input window, operand 1, single buffered']
    #allocation3 [shape = 's32[1]{0}', space=sflag, size = 0x4, scoped, tag = 'scoped memory for tpu_custom_call.1']
    #allocation4 [shape = 's32[1]{0}', space=sflag, size = 0x4, scoped, tag = 'scoped memory for tpu_custom_call.1']
    #allocation5 [shape = 'u8[16384]{0}', space=vmem, size = 0x4000, scoped, tag = 'output window, operand 0, single buffered']
    %8 = vsyncpa [#allocation3], 0
    %9 = vsyncpa [#allocation4], 0
    // Predicated region
    $region2: #{tpu_custom_call.1} parent=1 // pred_check
      _
    $region3: #{tpu_custom_call.1} parent=1 // pred_check_branch
      %11 = sbr.rel (0) target = $region5
    $region4: #{tpu_custom_call.1} parent=1 // pred_region
      _
    $region5: #{tpu_custom_call.1} parent=1 // pred_fallthru
      _
    // Predicated region
    $region6: #{tpu_custom_call.1} parent=1 // pred_check
      _
    $region7: #{tpu_custom_call.1} parent=1 // pred_check_branch
      %13 = sbr.rel (0) target = $region9
    $region8: #{tpu_custom_call.1} parent=1 // pred_region
      %15 = vsyncadd [#allocation3], 0
      %s16 = sshll.u32 %s1, 4
      %s17 = int_to_ptr.hbm [resolvable:$true] %s16
      %s18 = sshll.u32 [#allocation2], 4
      %s19 = int_to_ptr.vmem [resolvable:$true] %s18
      %24 = dma.hbm_to_vmem [thread:$0]  %s17, 14336, %s19, [#allocation3], 128, 128, 8
    $region9: #{tpu_custom_call.1} parent=1 // pred_fallthru
      _
    // Predicated region
    $region10: #{tpu_custom_call.1} parent=1 // pred_check
      _
    $region11: #{tpu_custom_call.1} parent=1 // pred_check_branch
      %26 = sbr.rel (0) target = $region13
    $region12: #{tpu_custom_call.1} parent=1 // pred_region
      _
    $region13: #{tpu_custom_call.1} parent=1 // pred_fallthru
      _
    // Predicated region
    $region14: #{tpu_custom_call.1} parent=1 // pred_check
      _
    $region15: #{tpu_custom_call.1} parent=1 // pred_check_branch
      %28 = sbr.rel (0) target = $region17
    $region16: #{tpu_custom_call.1} parent=1 // pred_region
      %30 = dma.done [#allocation3], 14336
    $region17: #{tpu_custom_call.1} parent=1 // pred_fallthru
      _
    %v31 = vld [vmem:[%s0] sm:$0xff]
    %v32 = vld [vmem:[%s0 + $0x8] sm:$0xff]
    %v33 = vld [vmem:[%s0 + $0x1] sm:$0xff]
    %v34 = vld [vmem:[%s0 + $0x9] sm:$0xff]
    %v35 = vld [vmem:[%s0 + $0x2] sm:$0xff]
    %v36 = vld [vmem:[%s0 + $0xa] sm:$0xff]
    %v37 = vld [vmem:[%s0 + $0x3] sm:$0xff]
    %v38 = vld [vmem:[%s0 + $0xb] sm:$0xff]
    %v39 = vld [vmem:[%s0 + $0x4] sm:$0xff]
    %v40 = vld [vmem:[%s0 + $0xc] sm:$0xff]
    %v41 = vld [vmem:[%s0 + $0x5] sm:$0xff]
    %v42 = vld [vmem:[%s0 + $0xd] sm:$0xff]
    %v43 = vld [vmem:[%s0 + $0x6] sm:$0xff]
    %v44 = vld [vmem:[%s0 + $0xe] sm:$0xff]
    %s45 = scalar_lea.vmem %s0, 24
    %v46 = vld [vmem:[%s45] sm:$0xff]
    %v47 = vld [vmem:[%s45 + $0x8] sm:$0xff]
    %v48 = vld [vmem:[%s45 + $0x1] sm:$0xff]
    %v49 = vld [vmem:[%s45 + $0x9] sm:$0xff]
    %v50 = vld [vmem:[%s45 + $0x2] sm:$0xff]
    %v51 = vld [vmem:[%s45 + $0xa] sm:$0xff]
    %v52 = vld [vmem:[%s45 + $0x3] sm:$0xff]
    %v53 = vld [vmem:[%s45 + $0xb] sm:$0xff]
    %v54 = vld [vmem:[%s45 + $0x4] sm:$0xff]
    %v55 = vld [vmem:[%s45 + $0xc] sm:$0xff]
    %v56 = vld [vmem:[%s45 + $0x5] sm:$0xff]
    %v57 = vld [vmem:[%s45 + $0xd] sm:$0xff]
    %v58 = vld [vmem:[%s45 + $0x6] sm:$0xff]
    %v59 = vld [vmem:[%s45 + $0xe] sm:$0xff]
    %v60 = vld [vmem:[#allocation2] sm:$0xff]
    %v61 = vld [vmem:[#allocation2 + $0x8] sm:$0xff]
    %v62 = vld [vmem:[#allocation2 + $0x10] sm:$0xff]
    %v63 = vld [vmem:[#allocation2 + $0x18] sm:$0xff]
    %v64 = vld [vmem:[#allocation2 + $0x20] sm:$0xff]
    %v65 = vld [vmem:[#allocation2 + $0x28] sm:$0xff]
    %v66 = vld [vmem:[#allocation2 + $0x30] sm:$0xff]
    %v67 = vld [vmem:[#allocation2 + $0x38] sm:$0xff]
    %v68 = vld [vmem:[#allocation2 + $0x40] sm:$0xff]
    %v69 = vld [vmem:[#allocation2 + $0x48] sm:$0xff]
    %v70 = vld [vmem:[#allocation2 + $0x50] sm:$0xff]
    %v71 = vld [vmem:[#allocation2 + $0x58] sm:$0xff]
    %v72 = vld [vmem:[#allocation2 + $0x60] sm:$0xff]
    %v73 = vld [vmem:[#allocation2 + $0x68] sm:$0xff]
    %v74 = vld [vmem:[#allocation2 + $0x70] sm:$0xff]
    %v75 = vld [vmem:[#allocation2 + $0x78] sm:$0xff]
    %v76 = vld [vmem:[#allocation2 + $0x80] sm:$0xff]
    %v77 = vld [vmem:[#allocation2 + $0x88] sm:$0xff]
    %v78 = vld [vmem:[#allocation2 + $0x90] sm:$0xff]
    %v79 = vld [vmem:[#allocation2 + $0x98] sm:$0xff]
    %v80 = vld [vmem:[#allocation2 + $0xa0] sm:$0xff]
    %v81 = vld [vmem:[#allocation2 + $0xa8] sm:$0xff]
    %v82 = vld [vmem:[#allocation2 + $0xb0] sm:$0xff]
    %v83 = vld [vmem:[#allocation2 + $0xb8] sm:$0xff]
    %v84 = vld [vmem:[#allocation2 + $0xc0] sm:$0xff]
    %v85 = vld [vmem:[#allocation2 + $0xc8] sm:$0xff]
    %v86 = vld [vmem:[#allocation2 + $0xd0] sm:$0xff]
    %v87 = vld [vmem:[#allocation2 + $0xd8] sm:$0xff]
    %v88 = vld [vmem:[#allocation2 + $0xe0] sm:$0xff]
    %v89 = vld [vmem:[#allocation2 + $0xe8] sm:$0xff]
    %v90 = vld [vmem:[#allocation2 + $0xf0] sm:$0xff]
    %v91 = vld [vmem:[#allocation2 + $0xf8] sm:$0xff]
    %v92 = vld [vmem:[#allocation2 + $0x100] sm:$0xff]
    %v93 = vld [vmem:[#allocation2 + $0x108] sm:$0xff]
    %v94 = vld [vmem:[#allocation2 + $0x110] sm:$0xff]
    %v95 = vld [vmem:[#allocation2 + $0x118] sm:$0xff]
    %v96 = vld [vmem:[#allocation2 + $0x120] sm:$0xff]
    %v97 = vld [vmem:[#allocation2 + $0x128] sm:$0xff]
    %v98 = vld [vmem:[#allocation2 + $0x130] sm:$0xff]
    %v99 = vld [vmem:[#allocation2 + $0x138] sm:$0xff]
    %v100 = vld [vmem:[#allocation2 + $0x140] sm:$0xff]
    %v101 = vld [vmem:[#allocation2 + $0x148] sm:$0xff]
    %v102 = vld [vmem:[#allocation2 + $0x150] sm:$0xff]
    %v103 = vld [vmem:[#allocation2 + $0x158] sm:$0xff]
    %v104 = vld [vmem:[#allocation2 + $0x160] sm:$0xff]
    %v105 = vld [vmem:[#allocation2 + $0x168] sm:$0xff]
    %v106 = vld [vmem:[#allocation2 + $0x170] sm:$0xff]
    %v107 = vld [vmem:[#allocation2 + $0x178] sm:$0xff]
    %v108 = vld [vmem:[#allocation2 + $0x180] sm:$0xff]
    %v109 = vld [vmem:[#allocation2 + $0x188] sm:$0xff]
    %v110 = vld [vmem:[#allocation2 + $0x190] sm:$0xff]
    %v111 = vld [vmem:[#allocation2 + $0x198] sm:$0xff]
    %v112 = vld [vmem:[#allocation2 + $0x1a0] sm:$0xff]
    %v113 = vld [vmem:[#allocation2 + $0x1a8] sm:$0xff]
    %v114 = vld [vmem:[#allocation2 + $0x1b0] sm:$0xff]
    %v115 = vld [vmem:[#allocation2 + $0x1b8] sm:$0xff]
    %v116 = vld [vmem:[#allocation2 + $0x1c0] sm:$0xff]
    %v117 = vld [vmem:[#allocation2 + $0x1c8] sm:$0xff]
    %v118 = vld [vmem:[#allocation2 + $0x1d0] sm:$0xff]
    %v119 = vld [vmem:[#allocation2 + $0x1d8] sm:$0xff]
    %v120 = vld [vmem:[#allocation2 + $0x1e0] sm:$0xff]
    %v121 = vld [vmem:[#allocation2 + $0x1e8] sm:$0xff]
    %v122 = vld [vmem:[#allocation2 + $0x1f0] sm:$0xff]
    %v123 = vld [vmem:[#allocation2 + $0x1f8] sm:$0xff]
    %v124 = vld [vmem:[#allocation2 + $0x200] sm:$0xff]
    %v125 = vld [vmem:[#allocation2 + $0x208] sm:$0xff]
    %v126 = vld [vmem:[#allocation2 + $0x210] sm:$0xff]
    %v127 = vld [vmem:[#allocation2 + $0x218] sm:$0xff]
    %v128 = vld [vmem:[#allocation2 + $0x220] sm:$0xff]
    %v129 = vld [vmem:[#allocation2 + $0x228] sm:$0xff]
    %v130 = vld [vmem:[#allocation2 + $0x230] sm:$0xff]
    %v131 = vld [vmem:[#allocation2 + $0x238] sm:$0xff]
    %v132 = vld [vmem:[#allocation2 + $0x240] sm:$0xff]
    %v133 = vld [vmem:[#allocation2 + $0x248] sm:$0xff]
    %v134 = vld [vmem:[#allocation2 + $0x250] sm:$0xff]
    %v135 = vld [vmem:[#allocation2 + $0x258] sm:$0xff]
    %v136 = vld [vmem:[#allocation2 + $0x260] sm:$0xff]
    %v137 = vld [vmem:[#allocation2 + $0x268] sm:$0xff]
    %v138 = vld [vmem:[#allocation2 + $0x270] sm:$0xff]
    %v139 = vld [vmem:[#allocation2 + $0x278] sm:$0xff]
    %v140 = vld [vmem:[#allocation2 + $0x280] sm:$0xff]
    %v141 = vld [vmem:[#allocation2 + $0x288] sm:$0xff]
    %v142 = vld [vmem:[#allocation2 + $0x290] sm:$0xff]
    %v143 = vld [vmem:[#allocation2 + $0x298] sm:$0xff]
    %v144 = vld [vmem:[#allocation2 + $0x2a0] sm:$0xff]
    %v145 = vld [vmem:[#allocation2 + $0x2a8] sm:$0xff]
    %v146 = vld [vmem:[#allocation2 + $0x2b0] sm:$0xff]
    %v147 = vld [vmem:[#allocation2 + $0x2b8] sm:$0xff]
    %v148 = vld [vmem:[#allocation2 + $0x2c0] sm:$0xff]
    %v149 = vld [vmem:[#allocation2 + $0x2c8] sm:$0xff]
    %v150 = vld [vmem:[#allocation2 + $0x2d0] sm:$0xff]
    %v151 = vld [vmem:[#allocation2 + $0x2d8] sm:$0xff]
    %v152 = vld [vmem:[#allocation2 + $0x2e0] sm:$0xff]
    %v153 = vld [vmem:[#allocation2 + $0x2e8] sm:$0xff]
    %v154 = vld [vmem:[#allocation2 + $0x2f0] sm:$0xff]
    %v155 = vld [vmem:[#allocation2 + $0x2f8] sm:$0xff]
    %v156 = vld [vmem:[#allocation2 + $0x300] sm:$0xff]
    %v157 = vld [vmem:[#allocation2 + $0x308] sm:$0xff]
    %v158 = vld [vmem:[#allocation2 + $0x310] sm:$0xff]
    %v159 = vld [vmem:[#allocation2 + $0x318] sm:$0xff]
    %v160 = vld [vmem:[#allocation2 + $0x320] sm:$0xff]
    %v161 = vld [vmem:[#allocation2 + $0x328] sm:$0xff]
    %v162 = vld [vmem:[#allocation2 + $0x330] sm:$0xff]
    %v163 = vld [vmem:[#allocation2 + $0x338] sm:$0xff]
    %v164 = vld [vmem:[#allocation2 + $0x340] sm:$0xff]
    %v165 = vld [vmem:[#allocation2 + $0x348] sm:$0xff]
    %v166 = vld [vmem:[#allocation2 + $0x350] sm:$0xff]
    %v167 = vld [vmem:[#allocation2 + $0x358] sm:$0xff]
    %v168 = vld [vmem:[#allocation2 + $0x360] sm:$0xff]
    %v169 = vld [vmem:[#allocation2 + $0x368] sm:$0xff]
    %v170 = vld [vmem:[#allocation2 + $0x370] sm:$0xff]
    %v171 = vld [vmem:[#allocation2 + $0x378] sm:$0xff]
    %v172 = vld [vmem:[%s2] sm:$0x1]
    %v174 = vperm.slane %v172, 0
    %176 = vmatpush.msra.mxu0 %v75
    %177 = vmatpush.msra.mxu0 %v74
    %178 = vmatpush.msra.mxu0 %v73
    %179 = vmatpush.msra.mxu0 %v72
    %180 = vmatpush.msra.mxu0 %v71
    %181 = vmatpush.msra.mxu0 %v70
    %182 = vmatpush.msra.mxu0 %v69
    %183 = vmatpush.msra.mxu0 %v68
    %184 = vmatpush.msra.mxu0 %v67
    %185 = vmatpush.msra.mxu0 %v66
    %186 = vmatpush.msra.mxu0 %v65
    %187 = vmatpush.msra.mxu0 %v64
    %188 = vmatpush.msra.mxu0 %v63
    %189 = vmatpush.msra.mxu0 %v62
    %190 = vmatpush.msra.mxu0 %v61
    %191 = vmatpush.msra.mxu0 %v60
    %192 = vmatmul.f32.gmra.mxu0 %v31
    %v193 = vpop.f32.mrf.mxu0
    %v194 = vadd.f32 %v174, %v193
    %195 = vmatmul.f32.gmra.mxu0 %v32
    %v196 = vpop.f32.mrf.mxu0
    %v197 = vadd.f32 %v174, %v196
    %198 = vmatmul.f32.gmra.mxu0 %v46
    %v199 = vpop.f32.mrf.mxu0
    %v200 = vadd.f32 %v174, %v199
    %201 = vmatmul.f32.gmra.mxu0 %v47
    %v202 = vpop.f32.mrf.mxu0
    %v203 = vadd.f32 %v174, %v202
    %204 = vdwg.mxu0
    %205 = vmatpush.msra.mxu0 %v91
    %206 = vmatpush.msra.mxu0 %v90
    %207 = vmatpush.msra.mxu0 %v89
    %208 = vmatpush.msra.mxu0 %v88
    %209 = vmatpush.msra.mxu0 %v87
    %210 = vmatpush.msra.mxu0 %v86
    %211 = vmatpush.msra.mxu0 %v85
    %212 = vmatpush.msra.mxu0 %v84
    %213 = vmatpush.msra.mxu0 %v83
    %214 = vmatpush.msra.mxu0 %v82
    %215 = vmatpush.msra.mxu0 %v81
    %216 = vmatpush.msra.mxu0 %v80
    %217 = vmatpush.msra.mxu0 %v79
    %218 = vmatpush.msra.mxu0 %v78
    %219 = vmatpush.msra.mxu0 %v77
    %220 = vmatpush.msra.mxu0 %v76
    %221 = vmatmul.f32.gmra.mxu0 %v33
    %v222 = vpop.f32.mrf.mxu0
    %v223 = vadd.f32 %v194, %v222
    %224 = vmatmul.f32.gmra.mxu0 %v34
    %v225 = vpop.f32.mrf.mxu0
    %v226 = vadd.f32 %v197, %v225
    %227 = vmatmul.f32.gmra.mxu0 %v48
    %v228 = vpop.f32.mrf.mxu0
    %v229 = vadd.f32 %v200, %v228
    %230 = vmatmul.f32.gmra.mxu0 %v49
    %v231 = vpop.f32.mrf.mxu0
    %v232 = vadd.f32 %v203, %v231
    %233 = vdwg.mxu0
    %234 = vmatpush.msra.mxu0 %v107
    %235 = vmatpush.msra.mxu0 %v106
    %236 = vmatpush.msra.mxu0 %v105
    %237 = vmatpush.msra.mxu0 %v104
    %238 = vmatpush.msra.mxu0 %v103
    %239 = vmatpush.msra.mxu0 %v102
    %240 = vmatpush.msra.mxu0 %v101
    %241 = vmatpush.msra.mxu0 %v100
    %242 = vmatpush.msra.mxu0 %v99
    %243 = vmatpush.msra.mxu0 %v98
    %244 = vmatpush.msra.mxu0 %v97
    %245 = vmatpush.msra.mxu0 %v96
    %246 = vmatpush.msra.mxu0 %v95
    %247 = vmatpush.msra.mxu0 %v94
    %248 = vmatpush.msra.mxu0 %v93
    %249 = vmatpush.msra.mxu0 %v92
    %250 = vmatmul.f32.gmra.mxu0 %v35
    %v251 = vpop.f32.mrf.mxu0
    %v252 = vadd.f32 %v223, %v251
    %253 = vmatmul.f32.gmra.mxu0 %v36
    %v254 = vpop.f32.mrf.mxu0
    %v255 = vadd.f32 %v226, %v254
    %256 = vmatmul.f32.gmra.mxu0 %v50
    %v257 = vpop.f32.mrf.mxu0
    %v258 = vadd.f32 %v229, %v257
    %259 = vmatmul.f32.gmra.mxu0 %v51
    %v260 = vpop.f32.mrf.mxu0
    %v261 = vadd.f32 %v232, %v260
    %262 = vdwg.mxu0
    %263 = vmatpush.msra.mxu0 %v123
    %264 = vmatpush.msra.mxu0 %v122
    %265 = vmatpush.msra.mxu0 %v121
    %266 = vmatpush.msra.mxu0 %v120
    %267 = vmatpush.msra.mxu0 %v119
    %268 = vmatpush.msra.mxu0 %v118
    %269 = vmatpush.msra.mxu0 %v117
    %270 = vmatpush.msra.mxu0 %v116
    %271 = vmatpush.msra.mxu0 %v115
    %272 = vmatpush.msra.mxu0 %v114
    %273 = vmatpush.msra.mxu0 %v113
    %274 = vmatpush.msra.mxu0 %v112
    %275 = vmatpush.msra.mxu0 %v111
    %276 = vmatpush.msra.mxu0 %v110
    %277 = vmatpush.msra.mxu0 %v109
    %278 = vmatpush.msra.mxu0 %v108
    %279 = vmatmul.f32.gmra.mxu0 %v37
    %v280 = vpop.f32.mrf.mxu0
    %v281 = vadd.f32 %v252, %v280
    %282 = vmatmul.f32.gmra.mxu0 %v38
    %v283 = vpop.f32.mrf.mxu0
    %v284 = vadd.f32 %v255, %v283
    %285 = vmatmul.f32.gmra.mxu0 %v52
    %v286 = vpop.f32.mrf.mxu0
    %v287 = vadd.f32 %v258, %v286
    %288 = vmatmul.f32.gmra.mxu0 %v53
    %v289 = vpop.f32.mrf.mxu0
    %v290 = vadd.f32 %v261, %v289
    %291 = vdwg.mxu0
    %292 = vmatpush.msra.mxu0 %v139
    %293 = vmatpush.msra.mxu0 %v138
    %294 = vmatpush.msra.mxu0 %v137
    %295 = vmatpush.msra.mxu0 %v136
    %296 = vmatpush.msra.mxu0 %v135
    %297 = vmatpush.msra.mxu0 %v134
    %298 = vmatpush.msra.mxu0 %v133
    %299 = vmatpush.msra.mxu0 %v132
    %300 = vmatpush.msra.mxu0 %v131
    %301 = vmatpush.msra.mxu0 %v130
    %302 = vmatpush.msra.mxu0 %v129
    %303 = vmatpush.msra.mxu0 %v128
    %304 = vmatpush.msra.mxu0 %v127
    %305 = vmatpush.msra.mxu0 %v126
    %306 = vmatpush.msra.mxu0 %v125
    %307 = vmatpush.msra.mxu0 %v124
    %308 = vmatmul.f32.gmra.mxu0 %v39
    %v309 = vpop.f32.mrf.mxu0
    %v310 = vadd.f32 %v281, %v309
    %311 = vmatmul.f32.gmra.mxu0 %v40
    %v312 = vpop.f32.mrf.mxu0
    %v313 = vadd.f32 %v284, %v312
    %314 = vmatmul.f32.gmra.mxu0 %v54
    %v315 = vpop.f32.mrf.mxu0
    %v316 = vadd.f32 %v287, %v315
    %317 = vmatmul.f32.gmra.mxu0 %v55
    %v318 = vpop.f32.mrf.mxu0
    %v319 = vadd.f32 %v290, %v318
    %320 = vdwg.mxu0
    %321 = vmatpush.msra.mxu0 %v155
    %322 = vmatpush.msra.mxu0 %v154
    %323 = vmatpush.msra.mxu0 %v153
    %324 = vmatpush.msra.mxu0 %v152
    %325 = vmatpush.msra.mxu0 %v151
    %326 = vmatpush.msra.mxu0 %v150
    %327 = vmatpush.msra.mxu0 %v149
    %328 = vmatpush.msra.mxu0 %v148
    %329 = vmatpush.msra.mxu0 %v147
    %330 = vmatpush.msra.mxu0 %v146
    %331 = vmatpush.msra.mxu0 %v145
    %332 = vmatpush.msra.mxu0 %v144
    %333 = vmatpush.msra.mxu0 %v143
    %334 = vmatpush.msra.mxu0 %v142
    %335 = vmatpush.msra.mxu0 %v141
    %336 = vmatpush.msra.mxu0 %v140
    %337 = vmatmul.f32.gmra.mxu0 %v41
    %v338 = vpop.f32.mrf.mxu0
    %v339 = vadd.f32 %v310, %v338
    %340 = vmatmul.f32.gmra.mxu0 %v42
    %v341 = vpop.f32.mrf.mxu0
    %v342 = vadd.f32 %v313, %v341
    %343 = vmatmul.f32.gmra.mxu0 %v56
    %v344 = vpop.f32.mrf.mxu0
    %v345 = vadd.f32 %v316, %v344
    %346 = vmatmul.f32.gmra.mxu0 %v57
    %v347 = vpop.f32.mrf.mxu0
    %v348 = vadd.f32 %v319, %v347
    %349 = vdwg.mxu0
    %350 = vmatpush.msra.mxu0 %v171
    %351 = vmatpush.msra.mxu0 %v170
    %352 = vmatpush.msra.mxu0 %v169
    %353 = vmatpush.msra.mxu0 %v168
    %354 = vmatpush.msra.mxu0 %v167
    %355 = vmatpush.msra.mxu0 %v166
    %356 = vmatpush.msra.mxu0 %v165
    %357 = vmatpush.msra.mxu0 %v164
    %358 = vmatpush.msra.mxu0 %v163
    %359 = vmatpush.msra.mxu0 %v162
    %360 = vmatpush.msra.mxu0 %v161
    %361 = vmatpush.msra.mxu0 %v160
    %362 = vmatpush.msra.mxu0 %v159
    %363 = vmatpush.msra.mxu0 %v158
    %364 = vmatpush.msra.mxu0 %v157
    %365 = vmatpush.msra.mxu0 %v156
    %366 = vmatmul.f32.gmra.mxu0 %v43
    %v367 = vpop.f32.mrf.mxu0
    %v368 = vadd.f32 %v339, %v367
    %369 = vmatmul.f32.gmra.mxu0 %v44
    %v370 = vpop.f32.mrf.mxu0
    %v371 = vadd.f32 %v342, %v370
    %372 = vmatmul.f32.gmra.mxu0 %v58
    %v373 = vpop.f32.mrf.mxu0
    %v374 = vadd.f32 %v345, %v373
    %375 = vmatmul.f32.gmra.mxu0 %v59
    %v376 = vpop.f32.mrf.mxu0
    %v377 = vadd.f32 %v348, %v376
    %378 = vdwg.mxu0
    %379 = vst [vmem:[#allocation5] sm:$0xff] %v368
    %380 = vst [vmem:[#allocation5 + $0x8] sm:$0xff] %v371
    %s381 = scalar_lea.vmem [#allocation5], 16
    %382 = vst [vmem:[%s381] sm:$0xff] %v374
    %383 = vst [vmem:[%s381 + $0x8] sm:$0xff] %v377
    // Predicated region
    $region18: #{tpu_custom_call.1} parent=1 // pred_check
      _
    $region19: #{tpu_custom_call.1} parent=1 // pred_check_branch
      %385 = sbr.rel (0) target = $region21
    $region20: #{tpu_custom_call.1} parent=1 // pred_region
      %387 = vsyncadd [#allocation4], 0
      %s388 = sshll.u32 [#allocation5], 4
      %s389 = int_to_ptr.vmem [resolvable:$true] %s388
      %s390 = sshll.u32 %s3, 4
      %s391 = int_to_ptr.hbm [resolvable:$true] %s390
      %396 = dma.vmem_to_hbm [thread:$0]  %s389, 512, %s391, [#allocation4], 128, 128, 8
    $region21: #{tpu_custom_call.1} parent=1 // pred_fallthru
      _
    // Predicated region
    $region22: #{tpu_custom_call.1} parent=1 // pred_check
      _
    $region23: #{tpu_custom_call.1} parent=1 // pred_check_branch
      %398 = sbr.rel (0) target = $region25
    $region24: #{tpu_custom_call.1} parent=1 // pred_region
      %400 = dma.done [#allocation4], 512
    $region25: #{tpu_custom_call.1} parent=1 // pred_fallthru
      _
    %401 = vsyncpa [#allocation3], 1
    %402 = vsyncpa [#allocation4], 1

</llo_original>
